<compile_context>
chip_gen: v6e
topology: v6e:2x2x1
jax: 0.10.0
libtpu: 0.0.40
codegen_flags: <defaults>
</compile_context>

<pallas_src>
import functools

import jax
import jax.numpy as jnp
from jax.experimental import pallas as pl
from jax.experimental.pallas import tpu as pltpu


def _round_up(a: int, b: int) -> int:
    return (a + b - 1) // b * b


def _vq_loss_kernel(x_ref, e_ref, psum_ref, *, n_valid: int):
    """One N-tile: partial sum of min_k ||x_n - e_k||^2 over this tile's rows.

    x_ref:    (TILE_N, D) float32  input rows (garbage past row n_valid; masked)
    e_ref:    (K, D)      float32  codebook (resident, tiny)
    psum_ref: (1, 8, 128) float32  per-tile partial sum (broadcast-filled)
    """
    tile_n, _ = x_ref.shape

    x = x_ref[...]                                          # (TILE_N, D) f32
    e = e_ref[...]                                          # (K, D) f32

    # Per-row |x|^2 and per-codebook-row |e|^2.
    x2 = jnp.sum(x * x, axis=1, keepdims=True)              # (TILE_N, 1)
    e2 = jnp.sum(e * e, axis=1)[None, :]                    # (1, K)

    # x @ e.T on the MXU, f32 accumulation (memory-bound kernel, so full f32).
    xet = jax.lax.dot_general(
        x, e,
        dimension_numbers=(((1,), (1,)), ((), ())),
        preferred_element_type=jnp.float32)                 # (TILE_N, K)

    # min_k dist = x2 + min_k (e2 - 2 x.e); x2 hoisted out of the (N, K) plane.
    # Clamp at 0: the expanded form can dip slightly negative from cancellation
    # while the true squared distance cannot.
    m = jnp.min(e2 - 2.0 * xet, axis=1, keepdims=True)      # (TILE_N, 1)
    dist = jnp.maximum(x2 + m, 0.0)                         # (TILE_N, 1)

    # Mask rows past the true N (last grid block may be partial; its tail of
    # the VMEM buffer holds unspecified data, which jnp.where safely discards).
    row = (pl.program_id(0) * tile_n
           + jax.lax.broadcasted_iota(jnp.int32, (tile_n, 1), 0))
    dist = jnp.where(row < n_valid, dist, 0.0)

    # Lane-dense, unmasked store of this tile's partial sum.
    psum_ref[...] = jnp.broadcast_to(jnp.sum(dist), psum_ref.shape)


def kmeans_batch_forward(inputs, embedding_weight, *, tile_n: int = 8192):
    """Pallas equivalent of Kmeans_Batch.forward.

    inputs:           (batch, ..., D) float32 with D == embedding_weight.shape[1]
    embedding_weight: (K, D) float32 codebook
    returns:          (loss_vq, None, None) matching the PyTorch module
    """
    K, D = embedding_weight.shape
    flat = inputs.reshape(-1, D).astype(jnp.float32)
    n = flat.shape[0]

    # Tile size: multiple of 8 sublanes, no larger than the (8-aligned) problem.
    tile_n = max(8, min(_round_up(tile_n, 8), _round_up(n, 8)))
    num_tiles = pl.cdiv(n, tile_n)

    e = embedding_weight.astype(jnp.float32)
    kernel = functools.partial(_vq_loss_kernel, n_valid=n)

    partials = pl.pallas_call(
        kernel,
        out_shape=jax.ShapeDtypeStruct((num_tiles, 8, 128), jnp.float32),
        grid=(num_tiles,),
        in_specs=[
            pl.BlockSpec((tile_n, D), lambda i: (i, 0)),   # x: tiled over N
            pl.BlockSpec((K, D), lambda i: (0, 0)),        # codebook: resident
        ],
        out_specs=pl.BlockSpec((1, 8, 128), lambda i: (i, 0, 0)),
        compiler_params=pltpu.CompilerParams(
            dimension_semantics=("parallel",)),            # v7x: split N over 2 TCs
        cost_estimate=pl.CostEstimate(
            flops=2 * n * K * D + 6 * n * D,
            transcendentals=0,
            bytes_accessed=n * D * 4 + K * D * 4 + num_tiles * 8 * 128 * 4),
    )(flat, e)

    # Tiny finalization outside the kernel: sum of per-tile partials / (N * D).
    loss = jnp.sum(partials[:, 0, 0]) / jnp.float32(n * D)
    return loss, None, None


def _reference(inputs, embedding_weight):
    """Plain-JAX reference mirroring the PyTorch code (argmin + gather + MSE)."""
    D = embedding_weight.shape[1]
    flat = inputs.reshape(-1, D)
    dist = (jnp.sum(flat ** 2, axis=1, keepdims=True)
            + jnp.sum(embedding_weight ** 2, axis=1)
            - 2.0 * flat @ embedding_weight.T)
    idx = jnp.argmin(dist, axis=1)
    quantized = embedding_weight[idx].reshape(inputs.shape)
    return jnp.mean((quantized - inputs) ** 2)


if __name__ == "__main__":
    # Module hyperparameters (synthetic, small):
    num_gestures = 16           # K = num_embeddings
    win_size = 8
    num_pellets = 4
    D = win_size * num_pellets  # embedding_dim = 32
    batch, frames = 2, 9        # inputs: (2, 9, 32) -> flat N = 18 (exercises masking)

    key = jax.random.PRNGKey(0)
    k_x, k_e = jax.random.split(key)
    x = jax.random.normal(k_x, (batch, frames, D), dtype=jnp.float32)
    # nn.Embedding default init ~ N(0, 1), deterministic here:
    emb = jax.random.normal(k_e, (num_gestures, D), dtype=jnp.float32)

    ref = jax.block_until_ready(_reference(x, emb))

    # Multi-tile path: 3 grid steps, last block partially masked.
    loss_multi, _, _ = kmeans_batch_forward(x, emb, tile_n=8)
    loss_multi = jax.block_until_ready(loss_multi)
    assert jnp.allclose(loss_multi, ref, rtol=1e-3, atol=1e-4), (loss_multi, ref)

    # Default (single-tile) path.
    loss_vq, _, _ = kmeans_batch_forward(x, emb)
    loss_vq = jax.block_until_ready(loss_vq)
    assert jnp.allclose(loss_vq, ref, rtol=1e-3, atol=1e-4), (loss_vq, ref)

    print("KERNEL_OK")
</pallas_src>

<mosaic_0001>
module attributes {stable_mosaic.version = 11 : i64} {
  func.func @_vq_loss_kernel(%arg0: i32, %arg1: memref<8x32xf32, #tpu.memory_space<vmem>>, %arg2: memref<16x32xf32, #tpu.memory_space<vmem>>, %arg3: memref<1x8x128xf32, #tpu.memory_space<vmem>>) attributes {dimension_semantics = [#tpu.dimension_semantics<parallel>], iteration_bounds = array<i64: 3>, scalar_prefetch = 0 : i64, scratch_operands = 0 : i64, tpu.core_type = #tpu.core_type<tc>, window_params = [{transform_indices = @transform_0, window_bounds = array<i64: 8, 32>}, {pipeline_mode = #tpu.pipeline_mode<synchronous>, transform_indices = @transform_1, window_bounds = array<i64: 16, 32>}, {transform_indices = @transform_2, window_bounds = array<i64: 1, 8, 128>}]} {
    %c0 = arith.constant 0 : index
    %c0_0 = arith.constant 0 : index
    %0 = vector.load %arg1[%c0, %c0_0] : memref<8x32xf32, #tpu.memory_space<vmem>>, vector<8x32xf32>
    %c0_1 = arith.constant 0 : index
    %c0_2 = arith.constant 0 : index
    %1 = vector.load %arg2[%c0_1, %c0_2] : memref<16x32xf32, #tpu.memory_space<vmem>>, vector<16x32xf32>
    %2 = arith.mulf %0, %0 : vector<8x32xf32>
    %cst = arith.constant dense<0.000000e+00> : vector<8xf32>
    %3 = vector.multi_reduction <add>, %2, %cst [1] : vector<8x32xf32> to vector<8xf32>
    %4 = vector.shape_cast %3 : vector<8xf32> to vector<8x1xf32>
    %5 = arith.mulf %1, %1 : vector<16x32xf32>
    %cst_3 = arith.constant dense<0.000000e+00> : vector<16xf32>
    %6 = vector.multi_reduction <add>, %5, %cst_3 [1] : vector<16x32xf32> to vector<16xf32>
    %7 = vector.shape_cast %6 : vector<16xf32> to vector<1x16xf32>
    %cst_4 = arith.constant dense<0.000000e+00> : vector<8x16xf32>
    %8 = tpu.matmul %0, %1, %cst_4 {dimension_numbers = #tpu.dot_dimension_numbers<[1], [1], [0], [0], [0, 0, 1, 0], [], []>} : vector<8x32xf32>, vector<16x32xf32>, vector<8x16xf32> -> vector<8x16xf32>
    %cst_5 = arith.constant 2.000000e+00 : f32
    %9 = vector.broadcast %cst_5 : f32 to vector<8x16xf32>
    %10 = arith.mulf %9, %8 : vector<8x16xf32>
    %11 = vector.broadcast %7 : vector<1x16xf32> to vector<8x16xf32>
    %12 = arith.subf %11, %10 : vector<8x16xf32>
    %cst_6 = arith.constant dense<0x7F800000> : vector<8xf32>
    %13 = vector.multi_reduction <minimumf>, %12, %cst_6 [1] : vector<8x16xf32> to vector<8xf32>
    %14 = vector.shape_cast %13 : vector<8xf32> to vector<8x1xf32>
    %15 = arith.addf %4, %14 : vector<8x1xf32>
    %cst_7 = arith.constant 0.000000e+00 : f32
    %16 = vector.broadcast %cst_7 : f32 to vector<8x1xf32>
    %17 = arith.maximumf %15, %16 : vector<8x1xf32>
    %c8_i32 = arith.constant 8 : i32
    %18 = arith.muli %arg0, %c8_i32 : i32
    %19 = tpu.iota {dimensions = array<i32: 0>} : vector<8x1xi32>
    %20 = vector.broadcast %18 : i32 to vector<8x1xi32>
    %21 = arith.addi %20, %19 : vector<8x1xi32>
    %c18_i32 = arith.constant 18 : i32
    %22 = vector.broadcast %c18_i32 : i32 to vector<8x1xi32>
    %23 = arith.cmpi slt, %21, %22 : vector<8x1xi32>
    %cst_8 = arith.constant 0.000000e+00 : f32
    %24 = vector.broadcast %cst_8 : f32 to vector<8x1xf32>
    %25 = arith.select %23, %17, %24 : vector<8x1xi1>, vector<8x1xf32>
    %26 = vector.shape_cast %25 : vector<8x1xf32> to vector<1x8x1xf32>
    %cst_9 = arith.constant dense<0.000000e+00> : vector<1xf32>
    %27 = vector.multi_reduction <add>, %26, %cst_9 [1, 2] : vector<1x8x1xf32> to vector<1xf32>
    %28 = vector.shape_cast %27 : vector<1xf32> to vector<1x1x1xf32>
    %29 = vector.extract %28[0, 0, 0] : f32 from vector<1x1x1xf32>
    %30 = vector.broadcast %29 : f32 to vector<1x8x128xf32>
    %c0_10 = arith.constant 0 : index
    %c0_11 = arith.constant 0 : index
    %c0_12 = arith.constant 0 : index
    %31 = vector.load %arg3[%c0_10, %c0_11, %c0_12] : memref<1x8x128xf32, #tpu.memory_space<vmem>>, vector<1x8x128xf32>
    tpu.vector_store %arg3[%c0_10, %c0_11, %c0_12], %30 {strides = array<i32>} : memref<1x8x128xf32, #tpu.memory_space<vmem>>, vector<1x8x128xf32>,
    return
  }
  func.func @transform_0(%arg0: i32) -> (i32, i32) {
    %c0_i32 = arith.constant 0 : i32
    %c0_i32_0 = arith.constant 0 : i32
    return %arg0, %c0_i32 : i32, i32
  }
  func.func @transform_1(%arg0: i32) -> (i32, i32) {
    %c0_i32 = arith.constant 0 : i32
    %c0_i32_0 = arith.constant 0 : i32
    %c0_i32_1 = arith.constant 0 : i32
    return %c0_i32, %c0_i32_0 : i32, i32
  }
  func.func @transform_2(%arg0: i32) -> (i32, i32, i32) {
    %c0_i32 = arith.constant 0 : i32
    %c0_i32_0 = arith.constant 0 : i32
    %c0_i32_1 = arith.constant 0 : i32
    return %arg0, %c0_i32, %c0_i32_0 : i32, i32, i32
  }
}

</mosaic_0001>

<llo_original>
// kernel: tpu_custom_call.1
$region0: #{tpu_custom_call.1}
  #allocation0 [shape = 'u32[]', space=smem, size = 0x4, offset = 0x4, fixed_abs, tag = 'smem constant byte address 0x4 - core index']
  #allocation1 [shape = 'u32[144,128]{1,0:T(1,128)}', space=vmem, size = 0x12000, scoped, tag = 'internal scratch']
  %s0 = inlined_call_operand.hbm [shape: f32[18,32], index: 0, kind: input, shape index: {}]
  %s1 = inlined_call_operand.hbm [shape: f32[16,32], index: 1, kind: input, shape index: {}]
  %s2 = inlined_call_operand.hbm [shape: f32[3,8,128], index: 2, kind: output, shape index: {}]
  %s3 = sld [smem:[#allocation0]]
  $region49: #{tpu_custom_call.1} parent=0
    _
  %s5 = ssub.s32 1, %s3
  %s6 = scalar_select 0, %s5, %s3
  $region1: #{tpu_custom_call.1} parent=0
    #allocation2 [shape = 'u8[8192]{0}', space=vmem, size = 0x2000, scoped, tag = 'input window, operand 0']
    #allocation3 [shape = 's32[2]{0}', space=sflag, size = 0x8, scoped, tag = 'scoped memory for tpu_custom_call.1']
    #allocation4 [shape = 's32[2]{0}', space=sflag, size = 0x8, scoped, tag = 'scoped memory for tpu_custom_call.1']
    #allocation5 [shape = 'u8[8192]{0}', space=vmem, size = 0x2000, scoped, tag = 'input window, operand 1, single buffered']
    #allocation6 [shape = 's32[1]{0}', space=sflag, size = 0x4, scoped, tag = 'scoped memory for tpu_custom_call.1']
    #allocation7 [shape = 'u8[8192]{0}', space=vmem, size = 0x2000, scoped, tag = 'output window, operand 0']
    %7 = vsyncpa [#allocation3], 0
    %s8 = scalar_lea.sflag [#allocation3], 1
    %9 = vsyncpa %s8, 0
    %10 = vsyncpa [#allocation6], 0
    %11 = vsyncpa [#allocation4], 0
    %s12 = scalar_lea.sflag [#allocation4], 1
    %13 = vsyncpa %s12, 0
    loop: start=0, step=1, limit=5
    $region2: #{tpu_custom_call.1} parent=1 // loop_pre_header
      _
    $region3: #{tpu_custom_call.1} parent=1 // loop_header
      %s15 = sphi 0, %s19
      %p16 = scmp.ge.s32.totalorder %s15, 5
      %s25 = sphi 0, %s27
      %s28 = sphi 0, %s25
      %s29 = sphi 0, %s28
      %s45 = sphi 0, %s29
      %s49 = sphi 0, %s49
      %s51 = sphi 0, %s49
      %s52 = sphi 0, %s51
      %s66 = sphi 0, %s52
      %s72 = sphi 0, %s74
      %s75 = sphi 0, %s72
      %s76 = sphi 0, %s75
      %s92 = sphi 0, %s76
    $region4: #{tpu_custom_call.1} parent=1 // loop_header_branch
      %18 = sbr.rel (%p16) target = $region8
    $region5: #{tpu_custom_call.1} parent=1 // loop_body
      %s20 = ssub.s32 %s15, 1
      %s21 = ssub.s32 %s15, 2
      %s22 = sadd.s32 %s15, 1
      %s23 = ssub.s32 %s15, %s22
      %p24 = scmp.eq.s32.totalorder %s23, 0
      %s26 = sadd.s32 %s25, 1
      %s27 = scalar_select %p24, %s25, %s26
      %p30 = pneg %p24
      %p31 = scmp.eq.s32.totalorder %s15, 2
      %p32 = por %p30, %p31
      %p33 = scmp.ne.s32.totalorder %s25, %s28
      %p34 = scmp.eq.s32.totalorder %s15, 0
      %p35 = por %p33, %p34
      %p36 = scmp.ne.s32.totalorder %s25, %s28
      %p37 = scmp.eq.s32.totalorder %s20, 2
      %p38 = por %p36, %p37
      %p39 = scmp.ne.s32.totalorder %s28, %s29
      %p40 = scmp.eq.s32.totalorder %s20, 0
      %p41 = por %p39, %p40
      %p42 = scmp.ne.s32.totalorder %s28, %s29
      %p43 = scmp.eq.s32.totalorder %s21, 2
      %p44 = por %p42, %p43
      %p46 = scmp.ne.s32.totalorder %s29, %s45
      %p47 = scmp.eq.s32.totalorder %s21, 0
      %p48 = por %p46, %p47
      %s50 = sadd.s32 %s49, 1
      %p53 = scmp.eq.s32.totalorder %s15, 2
      %p54 = scmp.ne.s32.totalorder %s49, %s51
      %p55 = scmp.eq.s32.totalorder %s15, 0
      %p56 = por %p54, %p55
      %p57 = scmp.ne.s32.totalorder %s49, %s51
      %p58 = scmp.eq.s32.totalorder %s20, 2
      %p59 = por %p57, %p58
      %p60 = scmp.ne.s32.totalorder %s51, %s52
      %p61 = scmp.eq.s32.totalorder %s20, 0
      %p62 = por %p60, %p61
      %p63 = scmp.ne.s32.totalorder %s51, %s52
      %p64 = scmp.eq.s32.totalorder %s21, 2
      %p65 = por %p63, %p64
      %p67 = scmp.ne.s32.totalorder %s52, %s66
      %p68 = scmp.eq.s32.totalorder %s21, 0
      %p69 = por %p67, %p68
      %s70 = ssub.s32 %s15, %s22
      %p71 = scmp.eq.s32.totalorder %s70, 0
      %s73 = sadd.s32 %s72, 1
      %s74 = scalar_select %p71, %s72, %s73
      %p77 = pneg %p71
      %p78 = scmp.eq.s32.totalorder %s15, 2
      %p79 = por %p77, %p78
      %p80 = scmp.ne.s32.totalorder %s72, %s75
      %p81 = scmp.eq.s32.totalorder %s15, 0
      %p82 = por %p80, %p81
      %p83 = scmp.ne.s32.totalorder %s72, %s75
      %p84 = scmp.eq.s32.totalorder %s20, 2
      %p85 = por %p83, %p84
      %p86 = scmp.ne.s32.totalorder %s75, %s76
      %p87 = scmp.eq.s32.totalorder %s20, 0
      %p88 = por %p86, %p87
      %p89 = scmp.ne.s32.totalorder %s75, %s76
      %p90 = scmp.eq.s32.totalorder %s21, 2
      %p91 = por %p89, %p90
      %p93 = scmp.ne.s32.totalorder %s76, %s92
      %p94 = scmp.eq.s32.totalorder %s21, 0
      %p95 = por %p93, %p94
      %p96 = scmp.le.s32.totalorder 1, %s15
      %p97 = scmp.lt.s32.totalorder %s15, 4
      %p98 = pnand %p96, %p97
      %p99 = pneg %p98
      // Predicated region
      $region9: #{tpu_custom_call.1} parent=5 // pred_check
        _
      $region10: #{tpu_custom_call.1} parent=5 // pred_check_branch
        %101 = sbr.rel (%p98) target = $region12
      $region11: #{tpu_custom_call.1} parent=5 // pred_region
        %s102 = ssub.s32 %s15, 1
        // Predicated region
        $region13: #{tpu_custom_call.1} parent=11 // pred_check
          %p103 = pneg %p62
        $region14: #{tpu_custom_call.1} parent=11 // pred_check_branch
          %105 = sbr.rel (%p103) target = $region16
        $region15: #{tpu_custom_call.1} parent=11 // pred_region
          %s107 = ssub.s32 256, 256
          %108 = vsyncadd [#allocation6], %s107
          %s109 = sshll.u32 [#allocation5], 4
          %s110 = int_to_ptr.vmem [resolvable:$true] %s109
          %115 = dma.hbm_to_vmem [thread:$0]  %s1, 256, %s110, [#allocation6], 128, 128, 8
        $region16: #{tpu_custom_call.1} parent=11 // pred_fallthru
          _
      $region12: #{tpu_custom_call.1} parent=5 // pred_fallthru
        _
      %p116 = scmp.lt.s32.totalorder %s15, 3
      // Predicated region
      $region17: #{tpu_custom_call.1} parent=5 // pred_check
        %p117 = pneg %p116
      $region18: #{tpu_custom_call.1} parent=5 // pred_check_branch
        %119 = sbr.rel (%p117) target = $region20
      $region19: #{tpu_custom_call.1} parent=5 // pred_region
        // Predicated region
        $region21: #{tpu_custom_call.1} parent=19 // pred_check
          %p120 = pneg %p35
        $region22: #{tpu_custom_call.1} parent=19 // pred_check_branch
          %122 = sbr.rel (%p120) target = $region24
        $region23: #{tpu_custom_call.1} parent=19 // pred_region
          %s123 = sand.u32 %s25, 1
          %s124 = scalar_lea.sflag [#allocation3], %s123
          %s125 = sand.u32 %s25, 1
          %s126 = smul.addr %s125, 8
          %s127 = scalar_lea.vmem [#allocation2], %s126
          %s129 = ssub.s32 128, 128
          %130 = vsyncadd %s124, %s129
          %s131 = smul.addr %s15, 128
          %s132 = scalar_lea.hbm %s0, %s131
          %s134 = sshll.u32 %s127, 4
          %s135 = int_to_ptr.vmem [resolvable:$true] %s134
          %137 = dma.hbm_to_vmem [thread:$0]  %s132, 128, %s135, %s124
        $region24: #{tpu_custom_call.1} parent=19 // pred_fallthru
          _
      $region20: #{tpu_custom_call.1} parent=5 // pred_fallthru
        _
      %p138 = scmp.le.s32.totalorder 1, %s15
      %p139 = scmp.lt.s32.totalorder %s15, 4
      %p140 = pnand %p138, %p139
      %p141 = pneg %p140
      // Predicated region
      $region25: #{tpu_custom_call.1} parent=5 // pred_check
        _
      $region26: #{tpu_custom_call.1} parent=5 // pred_check_branch
        %143 = sbr.rel (%p140) target = $region28
      $region27: #{tpu_custom_call.1} parent=5 // pred_region
        %s144 = ssub.s32 %s15, 1
        %s145 = sand.u32 %s28, 1
        %s146 = scalar_lea.sflag [#allocation3], %s145
        %s147 = sand.u32 %s28, 1
        %s148 = smul.addr %s147, 8
        %s149 = scalar_lea.vmem [#allocation2], %s148
        // Predicated region
        $region29: #{tpu_custom_call.1} parent=27 // pred_check
          %p150 = pneg %p41
        $region30: #{tpu_custom_call.1} parent=27 // pred_check_branch
          %152 = sbr.rel (%p150) target = $region32
        $region31: #{tpu_custom_call.1} parent=27 // pred_region
          %153 = dma.done %s146, 128
        $region32: #{tpu_custom_call.1} parent=27 // pred_fallthru
          _
        // Predicated region
        $region33: #{tpu_custom_call.1} parent=27 // pred_check
          %p154 = pneg %p62
        $region34: #{tpu_custom_call.1} parent=27 // pred_check_branch
          %156 = sbr.rel (%p154) target = $region36
        $region35: #{tpu_custom_call.1} parent=27 // pred_region
          %157 = dma.done [#allocation6], 256
        $region36: #{tpu_custom_call.1} parent=27 // pred_fallthru
          _
        %s158 = sand.u32 %s28, 1
        %s159 = scalar_lea.sflag [#allocation3], %s158
        %s160 = sand.u32 %s28, 1
        %s161 = smul.addr %s160, 8
        %s162 = scalar_lea.vmem [#allocation2], %s161
        %p163 = pneg %p41
        %p164 = pneg %p38
        %p165 = pneg %p62
        %p166 = pneg %p59
        %p167 = pneg %p88
        %p168 = pneg %p85
        %s169 = sand.u32 %s75, 1
        %s170 = scalar_lea.sflag [#allocation4], %s169
        %s171 = sand.u32 %s75, 1
        %s172 = smul.addr %s171, 8
        %s173 = scalar_lea.vmem [#allocation7], %s172
        %v174 = vld [vmem:[%s149] sm:$0xff]
        %v175 = vld [vmem:[#allocation5] sm:$0xff]
        %v176 = vld [vmem:[#allocation5 + $0x8] sm:$0xff]
        %v177 = vmul.f32 %v174, %v174
        %vm178 = vcmask 261120
        %v179 = vsel %vm178, %v177, 0.0
        %180 = vadd.xlane.f32.xlu0 %v179
        %v181 = vpop.xlane.xlu0 %180
        %v182 = vmul.f32 %v175, %v175
        %v183 = vmul.f32 %v176, %v176
        %v184 = vsel %vm178, %v182, 0.0
        %185 = vadd.xlane.f32.xlu0 %v184
        %v186 = vpop.xlane.xlu0 %185
        %v187 = vsel %vm178, %v183, 0.0
        %188 = vadd.xlane.f32.xlu0 %v187
        %v189 = vpop.xlane.xlu0 %188
        %v191 = vsel %vm178, %v174, 0
        %v194 = vsel %vm178, %v175, 0
        %v197 = vsel %vm178, %v176, 0
        %199 = vmatprep.subr.mxu0 0.0
        %200 = vmatpush1.xpose.msra.mxu0 0.0
        %201 = vmatprep.subr.mxu0 0.0
        %202 = vmatpush1.xpose.msra.mxu0 0.0
        %203 = vmatprep.subr.mxu0 0.0
        %204 = vmatpush1.xpose.msra.mxu0 0.0
        %205 = vmatprep.subr.mxu0 0.0
        %206 = vmatpush1.xpose.msra.mxu0 0.0
        %207 = vmatprep.subr.mxu0 0.0
        %208 = vmatpush1.xpose.msra.mxu0 0.0
        %209 = vmatprep.subr.mxu0 0.0
        %210 = vmatpush1.xpose.msra.mxu0 0.0
        %211 = vmatprep.subr.mxu0 0.0
        %212 = vmatpush1.xpose.msra.mxu0 0.0
        %213 = vmatprep.subr.mxu0 0.0
        %214 = vmatpush1.xpose.msra.mxu0 0.0
        %215 = vmatprep.subr.mxu0 0.0
        %216 = vmatpush1.xpose.msra.mxu0 0.0
        %217 = vmatprep.subr.mxu0 0.0
        %218 = vmatpush1.xpose.msra.mxu0 0.0
        %219 = vmatprep.subr.mxu0 0.0
        %220 = vmatpush1.xpose.msra.mxu0 0.0
        %221 = vmatprep.subr.mxu0 0.0
        %222 = vmatpush1.xpose.msra.mxu0 0.0
        %223 = vmatprep.subr.mxu0 0.0
        %224 = vmatpush1.xpose.msra.mxu0 0.0
        %225 = vmatprep.subr.mxu0 0.0
        %226 = vmatpush1.xpose.msra.mxu0 0.0
        %227 = vmatprep.subr.mxu0 0.0
        %228 = vmatpush1.xpose.msra.mxu0 %v197
        %229 = vmatprep.subr.mxu0 0.0
        %230 = vmatpush1.xpose.msra.mxu0 %v194
        %231 = vmatprep.subr.mxu0 0.0
        %232 = vmatpush2.xpose.msra.mxu0 0.0
        %233 = vmatprep.subr.mxu0 0.0
        %234 = vmatpush2.xpose.msra.mxu0 0.0
        %235 = vmatprep.subr.mxu0 0.0
        %236 = vmatpush2.xpose.msra.mxu0 0.0
        %237 = vmatprep.subr.mxu0 0.0
        %238 = vmatpush2.xpose.msra.mxu0 0.0
        %239 = vmatprep.subr.mxu0 0.0
        %240 = vmatpush2.xpose.msra.mxu0 0.0
        %241 = vmatprep.subr.mxu0 0.0
        %242 = vmatpush2.xpose.msra.mxu0 0.0
        %243 = vmatprep.subr.mxu0 0.0
        %244 = vmatpush2.xpose.msra.mxu0 0.0
        %245 = vmatprep.subr.mxu0 0.0
        %246 = vmatpush2.xpose.msra.mxu0 0.0
        %247 = vmatprep.subr.mxu0 0.0
        %248 = vmatpush2.xpose.msra.mxu0 0.0
        %249 = vmatprep.subr.mxu0 0.0
        %250 = vmatpush2.xpose.msra.mxu0 0.0
        %251 = vmatprep.subr.mxu0 0.0
        %252 = vmatpush2.xpose.msra.mxu0 0.0
        %253 = vmatprep.subr.mxu0 0.0
        %254 = vmatpush2.xpose.msra.mxu0 0.0
        %255 = vmatprep.subr.mxu0 0.0
        %256 = vmatpush2.xpose.msra.mxu0 0.0
        %257 = vmatprep.subr.mxu0 0.0
        %258 = vmatpush2.xpose.msra.mxu0 0.0
        %259 = vmatprep.subr.mxu0 0.0
        %260 = vmatpush2.xpose.msra.mxu0 0.0
        %261 = vmatprep.subr.mxu0 0.0
        %262 = vmatpush2.xpose.msra.mxu0 0.0
        %263 = vmatprep.mubr.f32.mxu0 0.0
        %264 = vmatmul.mubr.f32.gmra.mxu0 %v191
        %v265 = vpop.f32.mrf.mxu0
        %v266 = vadd.f32 0.0, %v265
        %v267 = vpop.f32.mrf.mxu0
        %268 = vdwg.mxu0
        %v269 = vmul.f32 %v266, 2.0
        %v271 = vlaneseq
        %v272 = vshrl.u32 %v271, 7
        %v273 = vsub.s32 0, %v272
        %v274 = vrot.slane %v269, %v273
        %276 = vbcast.lane.b32.xlu0 %v274, 256
        %v277 = vpop.permute.xlu0 %276
        %s279 = sor.u32 256, 8
        %280 = vbcast.lane.b32.xlu0 %v274, %s279
        %v281 = vpop.permute.xlu0 %280
        %v282 = vlaneseq
        %v283 = vshrl.u32 %v282, 7
        %v284 = vsub.s32 1, %v283
        %v285 = vrot.slane %v269, %v284
        %287 = vbcast.lane.b32.xlu0 %v285, 256
        %v288 = vpop.permute.xlu0 %287
        %s290 = sor.u32 256, 8
        %291 = vbcast.lane.b32.xlu0 %v285, %s290
        %v292 = vpop.permute.xlu0 %291
        %v293 = vlaneseq
        %v294 = vshrl.u32 %v293, 7
        %v295 = vsub.s32 2, %v294
        %v296 = vrot.slane %v269, %v295
        %298 = vbcast.lane.b32.xlu0 %v296, 256
        %v299 = vpop.permute.xlu0 %298
        %s301 = sor.u32 256, 8
        %302 = vbcast.lane.b32.xlu0 %v296, %s301
        %v303 = vpop.permute.xlu0 %302
        %v304 = vlaneseq
        %v305 = vshrl.u32 %v304, 7
        %v306 = vsub.s32 3, %v305
        %v307 = vrot.slane %v269, %v306
        %309 = vbcast.lane.b32.xlu0 %v307, 256
        %v310 = vpop.permute.xlu0 %309
        %s312 = sor.u32 256, 8
        %313 = vbcast.lane.b32.xlu0 %v307, %s312
        %v314 = vpop.permute.xlu0 %313
        %v315 = vlaneseq
        %v316 = vshrl.u32 %v315, 7
        %v317 = vsub.s32 4, %v316
        %v318 = vrot.slane %v269, %v317
        %320 = vbcast.lane.b32.xlu0 %v318, 256
        %v321 = vpop.permute.xlu0 %320
        %s323 = sor.u32 256, 8
        %324 = vbcast.lane.b32.xlu0 %v318, %s323
        %v325 = vpop.permute.xlu0 %324
        %v326 = vlaneseq
        %v327 = vshrl.u32 %v326, 7
        %v328 = vsub.s32 5, %v327
        %v329 = vrot.slane %v269, %v328
        %331 = vbcast.lane.b32.xlu0 %v329, 256
        %v332 = vpop.permute.xlu0 %331
        %s334 = sor.u32 256, 8
        %335 = vbcast.lane.b32.xlu0 %v329, %s334
        %v336 = vpop.permute.xlu0 %335
        %v337 = vlaneseq
        %v338 = vshrl.u32 %v337, 7
        %v339 = vsub.s32 6, %v338
        %v340 = vrot.slane %v269, %v339
        %342 = vbcast.lane.b32.xlu0 %v340, 256
        %v343 = vpop.permute.xlu0 %342
        %s345 = sor.u32 256, 8
        %346 = vbcast.lane.b32.xlu0 %v340, %s345
        %v347 = vpop.permute.xlu0 %346
        %v348 = vlaneseq
        %v349 = vshrl.u32 %v348, 7
        %v350 = vsub.s32 7, %v349
        %v351 = vrot.slane %v269, %v350
        %353 = vbcast.lane.b32.xlu0 %v351, 256
        %v354 = vpop.permute.xlu0 %353
        %s356 = sor.u32 256, 8
        %357 = vbcast.lane.b32.xlu0 %v351, %s356
        %v358 = vpop.permute.xlu0 %357
        %v375 = vsub.f32 %v186, %v277
        %v376 = vsub.f32 %v189, %v281
        %v377 = vsub.f32 %v186, %v288
        %v378 = vsub.f32 %v189, %v292
        %v379 = vsub.f32 %v186, %v299
        %v380 = vsub.f32 %v189, %v303
        %v381 = vsub.f32 %v186, %v310
        %v382 = vsub.f32 %v189, %v314
        %v383 = vsub.f32 %v186, %v321
        %v384 = vsub.f32 %v189, %v325
        %v385 = vsub.f32 %v186, %v332
        %v386 = vsub.f32 %v189, %v336
        %v387 = vsub.f32 %v186, %v343
        %v388 = vsub.f32 %v189, %v347
        %v389 = vsub.f32 %v186, %v354
        %v390 = vsub.f32 %v189, %v358
        %407 = vset.pattern.permute.xlu0 0
        %408 = vperm.xlu0 %407, %v375
        %v409 = vpop.permute.xlu0 %408
        %410 = vset.pattern.permute.xlu0 0
        %411 = vperm.xlu0 %410, %v376
        %v412 = vpop.permute.xlu0 %411
        %413 = vset.pattern.permute.xlu0 0
        %414 = vperm.xlu0 %413, %v377
        %v415 = vpop.permute.xlu0 %414
        %416 = vset.pattern.permute.xlu0 0
        %417 = vperm.xlu0 %416, %v378
        %v418 = vpop.permute.xlu0 %417
        %419 = vset.pattern.permute.xlu0 0
        %420 = vperm.xlu0 %419, %v379
        %v421 = vpop.permute.xlu0 %420
        %422 = vset.pattern.permute.xlu0 0
        %423 = vperm.xlu0 %422, %v380
        %v424 = vpop.permute.xlu0 %423
        %425 = vset.pattern.permute.xlu0 0
        %426 = vperm.xlu0 %425, %v381
        %v427 = vpop.permute.xlu0 %426
        %428 = vset.pattern.permute.xlu0 0
        %429 = vperm.xlu0 %428, %v382
        %v430 = vpop.permute.xlu0 %429
        %431 = vset.pattern.permute.xlu0 0
        %432 = vperm.xlu0 %431, %v383
        %v433 = vpop.permute.xlu0 %432
        %434 = vset.pattern.permute.xlu0 0
        %435 = vperm.xlu0 %434, %v384
        %v436 = vpop.permute.xlu0 %435
        %437 = vset.pattern.permute.xlu0 0
        %438 = vperm.xlu0 %437, %v385
        %v439 = vpop.permute.xlu0 %438
        %440 = vset.pattern.permute.xlu0 0
        %441 = vperm.xlu0 %440, %v386
        %v442 = vpop.permute.xlu0 %441
        %443 = vset.pattern.permute.xlu0 0
        %444 = vperm.xlu0 %443, %v387
        %v445 = vpop.permute.xlu0 %444
        %446 = vset.pattern.permute.xlu0 0
        %447 = vperm.xlu0 %446, %v388
        %v448 = vpop.permute.xlu0 %447
        %449 = vset.pattern.permute.xlu0 0
        %450 = vperm.xlu0 %449, %v389
        %v451 = vpop.permute.xlu0 %450
        %452 = vset.pattern.permute.xlu0 0
        %453 = vperm.xlu0 %452, %v390
        %v454 = vpop.permute.xlu0 %453
        %v455 = vlaneseq
        %v456 = vand.u32 %v455, 127
        %v457 = vlaneseq
        %v458 = vshrl.u32 %v457, 7
        %v459 = vsub.s32 %v456, %v458
        %v460 = vrot.slane %v409, %v459
        %v461 = vadd.s32 %v456, 4294967288
        %v462 = vlaneseq
        %v463 = vshrl.u32 %v462, 7
        %v464 = vsub.s32 %v461, %v463
        %v465 = vrot.slane %v412, %v464
        %vm466 = vcmask 130112
        %v467 = vsel %vm466, %v465, %v460
        %v468 = vlaneseq
        %v469 = vshrl.u32 %v468, 7
        %v470 = vsub.s32 %v456, %v469
        %v471 = vrot.slane %v415, %v470
        %v472 = vlaneseq
        %v473 = vshrl.u32 %v472, 7
        %v474 = vsub.s32 %v461, %v473
        %v475 = vrot.slane %v418, %v474
        %v476 = vsel %vm466, %v475, %v471
        %v477 = vlaneseq
        %v478 = vshrl.u32 %v477, 7
        %v479 = vsub.s32 %v456, %v478
        %v480 = vrot.slane %v421, %v479
        %v481 = vlaneseq
        %v482 = vshrl.u32 %v481, 7
        %v483 = vsub.s32 %v461, %v482
        %v484 = vrot.slane %v424, %v483
        %v485 = vsel %vm466, %v484, %v480
        %v486 = vlaneseq
        %v487 = vshrl.u32 %v486, 7
        %v488 = vsub.s32 %v456, %v487
        %v489 = vrot.slane %v427, %v488
        %v490 = vlaneseq
        %v491 = vshrl.u32 %v490, 7
        %v492 = vsub.s32 %v461, %v491
        %v493 = vrot.slane %v430, %v492
        %v494 = vsel %vm466, %v493, %v489
        %v495 = vlaneseq
        %v496 = vshrl.u32 %v495, 7
        %v497 = vsub.s32 %v456, %v496
        %v498 = vrot.slane %v433, %v497
        %v499 = vlaneseq
        %v500 = vshrl.u32 %v499, 7
        %v501 = vsub.s32 %v461, %v500
        %v502 = vrot.slane %v436, %v501
        %v503 = vsel %vm466, %v502, %v498
        %v504 = vlaneseq
        %v505 = vshrl.u32 %v504, 7
        %v506 = vsub.s32 %v456, %v505
        %v507 = vrot.slane %v439, %v506
        %v508 = vlaneseq
        %v509 = vshrl.u32 %v508, 7
        %v510 = vsub.s32 %v461, %v509
        %v511 = vrot.slane %v442, %v510
        %v512 = vsel %vm466, %v511, %v507
        %v513 = vlaneseq
        %v514 = vshrl.u32 %v513, 7
        %v515 = vsub.s32 %v456, %v514
        %v516 = vrot.slane %v445, %v515
        %v517 = vlaneseq
        %v518 = vshrl.u32 %v517, 7
        %v519 = vsub.s32 %v461, %v518
        %v520 = vrot.slane %v448, %v519
        %v521 = vsel %vm466, %v520, %v516
        %v522 = vlaneseq
        %v523 = vshrl.u32 %v522, 7
        %v524 = vsub.s32 %v456, %v523
        %v525 = vrot.slane %v451, %v524
        %v526 = vlaneseq
        %v527 = vshrl.u32 %v526, 7
        %v528 = vsub.s32 %v461, %v527
        %v529 = vrot.slane %v454, %v528
        %v530 = vsel %vm466, %v529, %v525
        %vm531 = vcmask 1041409
        %v532 = vsel %vm531, %v476, %v467
        %vm533 = vcmask 1042434
        %v534 = vsel %vm533, %v485, %v532
        %vm535 = vcmask 1043459
        %v536 = vsel %vm535, %v494, %v534
        %vm537 = vcmask 1044484
        %v538 = vsel %vm537, %v503, %v536
        %vm539 = vcmask 1045509
        %v540 = vsel %vm539, %v512, %v538
        %vm541 = vcmask 1046534
        %v542 = vsel %vm541, %v521, %v540
        %vm543 = vcmask 1047559
        %v544 = vsel %vm543, %v530, %v542
        %vm546 = vcmask 130048
        %v547 = vsel %vm546, %v544, inf
        %548 = vmin.xlane.f32.xlu0 %v547
        %v549 = vpop.xlane.xlu0 %548
        %v550 = vadd.f32 %v181, %v549
        %v551 = vmax.f32 %v550, 0.0
        %s552 = smul.u32 %s20, 8
        %v553 = vlaneseq
        %v554 = vshrl.u32 %v553, 7
        %v555 = vstv %s552
        %v556 = vadd.s32 %v555, %v554
        %vm557 = vcmp.lt.s32.totalorder %v556, 18
        %v558 = vsel %vm557, %v551, 0.0
        %vm559 = vcmask 7168
        %v560 = vsel %vm559, %v558, 0.0
        %561 = vadd.xlane.f32.xlu0 %v560
        %v562 = vpop.xlane.xlu0 %561
        %v563 = vrot.slane %v562, 4
        %v564 = vadd.f32 %v562, %v563
        %v565 = vrot.slane %v564, 2
        %v566 = vadd.f32 %v564, %v565
        %v567 = vrot.slane %v566, 1
        %v568 = vadd.f32 %v566, %v567
        %s569 = vtos %v568
        %v570 = vstv %s569
        %571 = vst [vmem:[%s173] sm:$0xff] %v570
        %s572 = sand.u32 %s75, 1
        %s573 = scalar_lea.sflag [#allocation4], %s572
        %s574 = sand.u32 %s75, 1
        %s575 = smul.addr %s574, 8
        %s576 = scalar_lea.vmem [#allocation7], %s575
        // Predicated region
        $region37: #{tpu_custom_call.1} parent=27 // pred_check
          %p577 = pneg %p85
        $region38: #{tpu_custom_call.1} parent=27 // pred_check_branch
          %579 = sbr.rel (%p577) target = $region40
        $region39: #{tpu_custom_call.1} parent=27 // pred_region
          %s581 = ssub.s32 128, 128
          %582 = vsyncadd %s573, %s581
          %s583 = smul.addr %s20, 128
          %s584 = scalar_lea.hbm %s2, %s583
          %s586 = sshll.u32 %s576, 4
          %s587 = int_to_ptr.vmem [resolvable:$true] %s586
          %589 = dma.vmem_to_hbm [thread:$0]  %s587, 128, %s584, %s573
        $region40: #{tpu_custom_call.1} parent=27 // pred_fallthru
          _
      $region28: #{tpu_custom_call.1} parent=5 // pred_fallthru
        _
      %p590 = scmp.le.s32.totalorder 2, %s15
      // Predicated region
      $region41: #{tpu_custom_call.1} parent=5 // pred_check
        %p591 = pneg %p590
      $region42: #{tpu_custom_call.1} parent=5 // pred_check_branch
        %593 = sbr.rel (%p591) target = $region44
      $region43: #{tpu_custom_call.1} parent=5 // pred_region
        %s594 = ssub.s32 %s15, 2
        // Predicated region
        $region45: #{tpu_custom_call.1} parent=43 // pred_check
          %p595 = pneg %p91
        $region46: #{tpu_custom_call.1} parent=43 // pred_check_branch
          %597 = sbr.rel (%p595) target = $region48
        $region47: #{tpu_custom_call.1} parent=43 // pred_region
          %s598 = sand.u32 %s76, 1
          %s599 = scalar_lea.sflag [#allocation4], %s598
          %s600 = sand.u32 %s76, 1
          %s601 = smul.addr %s600, 8
          %s602 = scalar_lea.vmem [#allocation7], %s601
          %603 = dma.done %s599, 128
        $region48: #{tpu_custom_call.1} parent=43 // pred_fallthru
          _
      $region44: #{tpu_custom_call.1} parent=5 // pred_fallthru
        _
    $region6: #{tpu_custom_call.1} parent=1 // loop_footer
      %s19 = sadd.s32 1, %s15
    $region7: #{tpu_custom_call.1} parent=1 // loop_footer_branch
      %14 = sbr.rel target = $region3
    $region8: #{tpu_custom_call.1} parent=1 // loop_exit
      _
    %604 = vsyncpa [#allocation3], 1
    %s605 = scalar_lea.sflag [#allocation3], 1
    %606 = vsyncpa %s605, 1
    %607 = vsyncpa [#allocation6], 1
    %608 = vsyncpa [#allocation4], 1
    %s609 = scalar_lea.sflag [#allocation4], 1
    %610 = vsyncpa %s609, 1

</llo_original>
